<compile_context>
chip_gen: v5e
topology: v5e:2x2
jax: 0.10.0
libtpu: 0.0.40
codegen_flags: <defaults>
</compile_context>

<pallas_src>
import functools

import jax
import jax.numpy as jnp
from jax.experimental import pallas as pl
from jax.experimental.pallas import tpu as pltpu

_LANES = 128          # lane width of a vreg; output last dim is lane-dense
_MAX_TILE_ROWS = 512  # 512x128 int32 = 256 KiB per pipeline buffer


def _randint_kernel(num_classes, seed_ref, o_ref):
    """Fill o_ref (int32 [tile_rows, 128]) with uniform ints in [0, num_classes)."""
    tile_rows = o_ref.shape[0]
    pid = pl.program_id(0)

    # Global linear element index for every slot of this tile.
    rows = jax.lax.broadcasted_iota(jnp.int32, o_ref.shape, 0)
    lanes = jax.lax.broadcasted_iota(jnp.int32, o_ref.shape, 1)
    linear = (pid * tile_rows + rows) * _LANES + lanes

    # Counter-based hash (splitmix32-style): stateless, so every tile / grid
    # step produces an independent stream without per-tile seeding.
    seed_u = seed_ref[0].astype(jnp.uint32) * jnp.uint32(0x9E3779B9)
    x = linear.astype(jnp.uint32) ^ seed_u
    x = x ^ (x >> jnp.uint32(16))
    x = x * jnp.uint32(0x7FEB352D)
    x = x ^ (x >> jnp.uint32(15))
    x = x * jnp.uint32(0x846CA68B)
    x = x ^ (x >> jnp.uint32(16))

    # Top 24 bits -> exact float32 integer -> scale to [0, num_classes).
    top = (x >> jnp.uint32(8)).astype(jnp.int32).astype(jnp.float32)
    idx = (top * jnp.float32(num_classes * 2.0 ** -24)).astype(jnp.int32)
    o_ref[...] = jnp.minimum(idx, jnp.int32(num_classes - 1))


def random_classifier_forward(x, num_classes, seed=0):
    """Pallas equivalent of random_classifier.forward(x, device).

    Returns an int32 array of shape (x.shape[0],) with values in
    [0, num_classes).  Pass a fresh `seed` per call for new randomness.
    """
    batch = x.shape[0]

    # Lane-dense output slab: (padded_rows, 128) int32, tiled over a 1-D grid.
    rows_needed = max(1, -(-batch // _LANES))
    if rows_needed >= _MAX_TILE_ROWS:
        tile_rows = _MAX_TILE_ROWS
    else:
        tile_rows = max(8, ((rows_needed + 7) // 8) * 8)
    padded_rows = ((rows_needed + tile_rows - 1) // tile_rows) * tile_rows
    grid = (padded_rows // tile_rows,)

    seed_arr = jnp.asarray([seed], dtype=jnp.int32)

    out = pl.pallas_call(
        functools.partial(_randint_kernel, num_classes),
        out_shape=jax.ShapeDtypeStruct((padded_rows, _LANES), jnp.int32),
        grid=grid,
        in_specs=[pl.BlockSpec(memory_space=pltpu.SMEM)],   # seed: scalar, no per-step DMA
        out_specs=pl.BlockSpec((tile_rows, _LANES), lambda i: (i, 0)),
        compiler_params=pltpu.CompilerParams(
            dimension_semantics=("parallel",)),              # 2x on v7x's 2 TCs
    )(seed_arr)

    flat = out.reshape(-1)
    return flat if flat.shape[0] == batch else flat[:batch]


def init_params(num_classes, key=None):
    """Deterministic init of the (unused) fc = nn.Linear(3, num_classes)."""
    if key is None:
        key = jax.random.PRNGKey(0)
    kw, kb = jax.random.split(key)
    bound = 1.0 / jnp.sqrt(3.0)  # PyTorch Linear default: U(-1/sqrt(fan_in), ...)
    w = jax.random.uniform(kw, (num_classes, 3), jnp.float32, -bound, bound)
    b = jax.random.uniform(kb, (num_classes,), jnp.float32, -bound, bound)
    # TODO(synk): fc is never used in the PyTorch forward (and the torch.save /
    # os.mkdir side effects in __init__ have no Pallas equivalent); kept only
    # for parameter-shape parity.
    return {"fc_w": w, "fc_b": b}


if __name__ == "__main__":
    NUM_CLASSES = 10

    key = jax.random.PRNGKey(0)
    params = init_params(NUM_CLASSES, key)

    # Example input consistent with a classifier over images: NCHW.
    x = jax.random.normal(key, (2, 4, 16, 16), dtype=jnp.float32)

    out = random_classifier_forward(x, NUM_CLASSES, seed=0)
    out = jax.block_until_ready(out)

    assert out.shape == (x.shape[0],)
    assert out.dtype == jnp.int32
    assert bool(jnp.all((out >= 0) & (out < NUM_CLASSES)))

    print("KERNEL_OK")
</pallas_src>

<mosaic_0001>
module attributes {stable_mosaic.version = 11 : i64} {
  func.func @_randint_kernel(%arg0: i32, %arg1: memref<1xi32, #tpu.memory_space<smem>>, %arg2: memref<8x128xi32, #tpu.memory_space<vmem>>) attributes {dimension_semantics = [#tpu.dimension_semantics<parallel>], iteration_bounds = array<i64: 1>, scalar_prefetch = 0 : i64, scratch_operands = 0 : i64, tpu.core_type = #tpu.core_type<tc>, window_params = [{transform_indices = @transform_0, window_bounds = array<i64: 1>}, {transform_indices = @transform_1, window_bounds = array<i64: 8, 128>}]} {
    %0 = tpu.iota {dimensions = array<i32: 0>} : vector<8x128xi32>
    %1 = tpu.iota {dimensions = array<i32: 1>} : vector<8x128xi32>
    %c8_i32 = arith.constant 8 : i32
    %2 = arith.muli %arg0, %c8_i32 : i32
    %3 = vector.broadcast %2 : i32 to vector<8x128xi32>
    %4 = arith.addi %3, %0 : vector<8x128xi32>
    %c128_i32 = arith.constant 128 : i32
    %5 = vector.broadcast %c128_i32 : i32 to vector<8x128xi32>
    %6 = arith.muli %4, %5 : vector<8x128xi32>
    %7 = arith.addi %6, %1 : vector<8x128xi32>
    %c0 = arith.constant 0 : index
    %8 = memref.load %arg1[%c0] : memref<1xi32, #tpu.memory_space<smem>>
    %c-1640531527_i32 = arith.constant -1640531527 : i32
    %9 = arith.muli %8, %c-1640531527_i32 : i32
    %10 = vector.broadcast %9 : i32 to vector<8x128xi32>
    %11 = arith.xori %7, %10 : vector<8x128xi32>
    %c16_i32 = arith.constant 16 : i32
    %12 = vector.broadcast %c16_i32 : i32 to vector<8x128xi32>
    %13 = arith.shrui %11, %12 : vector<8x128xi32>
    %14 = arith.xori %11, %13 : vector<8x128xi32>
    %c2146121005_i32 = arith.constant 2146121005 : i32
    %15 = vector.broadcast %c2146121005_i32 : i32 to vector<8x128xi32>
    %16 = arith.muli %14, %15 : vector<8x128xi32>
    %c15_i32 = arith.constant 15 : i32
    %17 = vector.broadcast %c15_i32 : i32 to vector<8x128xi32>
    %18 = arith.shrui %16, %17 : vector<8x128xi32>
    %19 = arith.xori %16, %18 : vector<8x128xi32>
    %c-2073254261_i32 = arith.constant -2073254261 : i32
    %20 = vector.broadcast %c-2073254261_i32 : i32 to vector<8x128xi32>
    %21 = arith.muli %19, %20 : vector<8x128xi32>
    %c16_i32_0 = arith.constant 16 : i32
    %22 = vector.broadcast %c16_i32_0 : i32 to vector<8x128xi32>
    %23 = arith.shrui %21, %22 : vector<8x128xi32>
    %24 = arith.xori %21, %23 : vector<8x128xi32>
    %c8_i32_1 = arith.constant 8 : i32
    %25 = vector.broadcast %c8_i32_1 : i32 to vector<8x128xi32>
    %26 = arith.shrui %24, %25 : vector<8x128xi32>
    %27 = arith.sitofp %26 : vector<8x128xi32> to vector<8x128xf32>
    %cst = arith.constant 5.96046448E-7 : f32
    %28 = vector.broadcast %cst : f32 to vector<8x128xf32>
    %29 = arith.mulf %27, %28 : vector<8x128xf32>
    %30 = arith.fptosi %29 : vector<8x128xf32> to vector<8x128xi32>
    %c9_i32 = arith.constant 9 : i32
    %31 = vector.broadcast %c9_i32 : i32 to vector<8x128xi32>
    %32 = arith.minsi %30, %31 : vector<8x128xi32>
    %c0_2 = arith.constant 0 : index
    %c0_3 = arith.constant 0 : index
    %33 = vector.load %arg2[%c0_2, %c0_3] : memref<8x128xi32, #tpu.memory_space<vmem>>, vector<8x128xi32>
    tpu.vector_store %arg2[%c0_2, %c0_3], %32 {strides = array<i32>} : memref<8x128xi32, #tpu.memory_space<vmem>>, vector<8x128xi32>,
    return
  }
  func.func @transform_0(%arg0: i32) -> i32 {
    %c0_i32 = arith.constant 0 : i32
    %c0_i32_0 = arith.constant 0 : i32
    return %c0_i32 : i32
  }
  func.func @transform_1(%arg0: i32) -> (i32, i32) {
    %c0_i32 = arith.constant 0 : i32
    %c0_i32_0 = arith.constant 0 : i32
    return %arg0, %c0_i32 : i32, i32
  }
}

</mosaic_0001>

<llo_original>
// kernel: tpu_custom_call.1
$region0: #{tpu_custom_call.1}
  #allocation0 [shape = 'u32[]', space=smem, size = 0x4, offset = 0x4, fixed_abs, tag = 'smem constant byte address 0x4 - core index']
  #allocation1 [shape = 'u32[72,128]{1,0:T(1,128)}', space=vmem, size = 0x9000, scoped, tag = 'internal scratch']
  #allocation2 [shape = 's32[1]{0:T(128)S(6)}', space=smem, size = 0x200, scoped, tag = 'scoped memory for tpu_custom_call.1']
  %s0 = inlined_call_operand.<no memory space> [shape: s32[1], index: 0, kind: input, shape index: {}]
  %s1 = inlined_call_operand.hbm [shape: s32[8,128], index: 1, kind: output, shape index: {}]
  %s2 = sld [smem:[#allocation0]]
  $region14: #{tpu_custom_call.1} parent=0
    _
  %s4 = ssub.s32 1, %s2
  %s5 = scalar_select 0, %s4, %s2
  %6 = sst [smem:[#allocation2]] %s0
  $region1: #{tpu_custom_call.1} parent=0
    #allocation3 [shape = 'u8[4096]{0}', space=vmem, size = 0x1000, scoped, tag = 'output window, operand 0, single buffered']
    #allocation4 [shape = 's32[1]{0}', space=sflag, size = 0x4, scoped, tag = 'scoped memory for tpu_custom_call.1']
    %7 = vsyncpa [#allocation4], 0
    // Predicated region
    $region2: #{tpu_custom_call.1} parent=1 // pred_check
      _
    $region3: #{tpu_custom_call.1} parent=1 // pred_check_branch
      %9 = sbr.rel (0) target = $region5
    $region4: #{tpu_custom_call.1} parent=1 // pred_region
      _
    $region5: #{tpu_custom_call.1} parent=1 // pred_fallthru
      _
    %v10 = vlaneseq
    %v11 = vshrl.u32 %v10, 7
    %v12 = vlaneseq
    %v13 = vand.u32 %v12, 127
    %s14 = smul.u32 0, 8
    %v15 = vstv %s14
    %v16 = vadd.s32 %v15, %v11
    %v17 = vmul.u32 %v16, 128
    %v18 = vadd.s32 %v17, %v13
    %s19 = sld [smem:[#allocation2]]
    %s20 = smul.u32 %s19, 2654435769
    %v21 = vstv %s20
    %v22 = vxor.u32 %v18, %v21
    %v23 = vshrl.u32 %v22, 16
    %v24 = vxor.u32 %v22, %v23
    %v25 = vmul.u32 %v24, 2146121005
    %v26 = vshrl.u32 %v25, 15
    %v27 = vxor.u32 %v25, %v26
    %v28 = vmul.u32 %v27, 2221713035
    %v29 = vshrl.u32 %v28, 16
    %v30 = vxor.u32 %v28, %v29
    %v31 = vshrl.u32 %v30, 8
    %v32 = vcvt.s32.f32 %v31
    %v33 = vmul.f32 %v32, 5.9604645e-07
    %v34 = vcvt.f32.s32.to.zero.pseudo %v33
    %vm35 = vcmp.lt.s32.totalorder %v34, 9
    %v36 = vsel %vm35, %v34, 9
    %37 = vst [vmem:[#allocation3] sm:$0xff] %v36
    // Predicated region
    $region6: #{tpu_custom_call.1} parent=1 // pred_check
      _
    $region7: #{tpu_custom_call.1} parent=1 // pred_check_branch
      %39 = sbr.rel (0) target = $region9
    $region8: #{tpu_custom_call.1} parent=1 // pred_region
      %41 = vsyncadd [#allocation4], 0
      %s43 = sshll.u32 [#allocation3], 4
      %s44 = int_to_ptr.vmem [resolvable:$true] %s43
      %s45 = sshll.u32 %s1, 4
      %s46 = int_to_ptr.hbm [resolvable:$true] %s45
      %48 = dma.vmem_to_hbm [thread:$0]  %s44, 128, %s46, [#allocation4]
    $region9: #{tpu_custom_call.1} parent=1 // pred_fallthru
      _
    // Predicated region
    $region10: #{tpu_custom_call.1} parent=1 // pred_check
      _
    $region11: #{tpu_custom_call.1} parent=1 // pred_check_branch
      %50 = sbr.rel (0) target = $region13
    $region12: #{tpu_custom_call.1} parent=1 // pred_region
      %52 = dma.done [#allocation4], 128
    $region13: #{tpu_custom_call.1} parent=1 // pred_fallthru
      _
    %53 = vsyncpa [#allocation4], 1

</llo_original>
